<compile_context>
chip_gen: v5e
topology: v5e:2x2
jax: 0.10.0
libtpu: 0.0.40
codegen_flags: <defaults>
</compile_context>

<pallas_src>
import functools

import jax
import jax.numpy as jnp
from jax.experimental import pallas as pl
from jax.experimental.pallas import tpu as pltpu
import numpy as np


def _round_up(x, m):
    return (x + m - 1) // m * m


# ---------------------------------------------------------------------------
# Kernel 1: parallel (non-recurrent) input projection
#   gi_static = [emb | z] @ W_in_pad + bias_static     (rows = B_pad*L_pad)
# bias_static already contains b_ih (all gates) + b_hh (r and z gates only).
# ---------------------------------------------------------------------------
def input_proj_kernel(x_ref, w_ref, b_ref, o_ref):
    o_ref[...] = (jnp.dot(x_ref[...], w_ref[...],
                          preferred_element_type=jnp.float32)
                  + b_ref[...]).astype(o_ref.dtype)


def input_projection(x_flat, w_in_pad, bias_static):
    """x_flat: (R, K) f32; w_in_pad: (K, 3*Hp); bias_static: (1, 3*Hp)."""
    R, K = x_flat.shape
    N = w_in_pad.shape[1]
    TM = 512 if R >= 512 else _round_up(R, 8)   # big tiles: ~85% of HBM roofline
    R_pad = _round_up(R, TM)
    if R_pad != R:
        x_flat = jnp.pad(x_flat, ((0, R_pad - R), (0, 0)))

    out = pl.pallas_call(
        input_proj_kernel,
        out_shape=jax.ShapeDtypeStruct((R_pad, N), jnp.float32),
        grid_spec=pltpu.PrefetchScalarGridSpec(
            num_scalar_prefetch=0,
            grid=(R_pad // TM,),
            in_specs=[
                pl.BlockSpec((TM, K), lambda i: (i, 0)),
                pl.BlockSpec((K, N), lambda i: (0, 0)),
                pl.BlockSpec((1, N), lambda i: (0, 0)),
            ],
            out_specs=pl.BlockSpec((TM, N), lambda i: (i, 0)),
        ),
        compiler_params=pltpu.CompilerParams(
            dimension_semantics=("parallel",)),   # sharded across TCs on v7x
    )(x_flat, w_in_pad, bias_static)
    return out[:R]


# ---------------------------------------------------------------------------
# Kernel 2: serial GRU recurrence, T timesteps per grid step.
# Per step: ONE fused recurrent matmul  [h|y] @ W_rec -> [r | z | n_i | n_h],
# gates, fc_layers, fc.  Carries live in vregs inside the unrolled loop and
# hit VMEM scratch once per chunk.  Output chunk is a lane-dense (B, T*Y) slab.
# ---------------------------------------------------------------------------
def decoder_rnn_kernel(gi_ref, yinit_ref, h0_ref, wrec_ref, bhhn_ref,
                       w1_ref, b1_ref, wf_ref, bf_ref,
                       out_ref, h_sc, y_sc, *, hp, y_dim, t_chunk):
    c = pl.program_id(0)

    # Initialize recurrent carries at the first chunk.
    @pl.when(c == 0)
    def _():
        h_sc[...] = h0_ref[...]
        y_sc[...] = yinit_ref[...]

    # Small constant operands hoisted (a few vregs); big weights are read
    # inside the loop so the compiler controls their live ranges.
    bhh_n = bhhn_ref[...]
    b1 = b1_ref[...]
    bf = bf_ref[...]

    h = h_sc[...]          # (B_pad, Hp)
    y = y_sc[...]          # (B_pad, Yp)
    g3 = 3 * hp

    # Statically unrolled time loop: all gi/gate slices and output stores use
    # static, lane-tile-aligned offsets.
    for t in range(t_chunk):
        gi_t = gi_ref[:, t * g3:(t + 1) * g3]                  # (B, 3*Hp)
        yh = jnp.concatenate([h, y], axis=-1)                  # (B, Hp+Yp)
        rec = jnp.dot(yh, wrec_ref[...],
                      preferred_element_type=jnp.float32)      # (B, 4*Hp)

        # PyTorch GRU gate order (r, z, n); b_hh for r/z already folded into gi.
        r = jax.nn.sigmoid(gi_t[:, 0:hp] + rec[:, 0:hp])
        u = jax.nn.sigmoid(gi_t[:, hp:2 * hp] + rec[:, hp:2 * hp])
        n = jnp.tanh(gi_t[:, 2 * hp:3 * hp] + rec[:, 2 * hp:3 * hp]
                     + r * (rec[:, 3 * hp:4 * hp] + bhh_n))
        h = (1.0 - u) * n + u * h                              # (B, Hp)

        # relu -> fc_layers (Linear + ReLU) -> fc
        o = jnp.maximum(h, 0.0)
        o = jnp.maximum(
            jnp.dot(o, w1_ref[...], preferred_element_type=jnp.float32) + b1,
            0.0)
        y = jnp.dot(o, wf_ref[...], preferred_element_type=jnp.float32) + bf

        # VMEM store at a static lane offset; HBM writeback is one dense
        # (B_pad, T*Y) slab per chunk (T*Y = 128 lanes by construction).
        out_ref[:, t * y_dim:(t + 1) * y_dim] = y[:, :y_dim].astype(out_ref.dtype)

    # Persist carries once per chunk.
    h_sc[...] = h
    y_sc[...] = y


def decoder_rnn_forward(y0, embed_out, zs, params, *, t_chunk=16):
    """Pallas implementation of DecoderRNN_2.forward.

    y0: (B, Y); embed_out: (B, L, E); zs: (B, L, Z)  ->  (B, L, Y)
    """
    f32 = jnp.float32
    B, L, E = embed_out.shape
    Z = zs.shape[-1]
    Y = y0.shape[-1]
    H0 = params['w_hh'].shape[1]
    H1 = params['fc1_w'].shape[0]

    Hp = _round_up(H0, 128)       # lane-aligned gate width
    H1p = _round_up(H1, 128)
    Yp = _round_up(Y, 128)
    B_pad = _round_up(B, 8)       # full sublanes

    # Chunk length: keep the output chunk lane-dense (T*Y multiple of 128);
    # otherwise fall back to a single chunk (block == full array dim).
    T = t_chunk
    if (T * Y) % 128 != 0:
        T = L
    L_pad = _round_up(L, T)
    n_chunks = L_pad // T
    # NOTE: padded trailing timesteps update the carries with garbage; this is
    # benign because outputs are sliced to [:L] and the final state is not
    # exposed.

    # ---- glue (once per call): fc_init_val (Dropout = eval identity) & h0 ----
    hi = jnp.maximum(y0 @ params['init1_w'].T + params['init1_b'], 0.0)
    y_init = (hi @ params['init2_w'].T + params['init2_b']).astype(f32)  # (B, Y)

    # ---- gate-lane-aligned weight preparation ----
    w_ih = params['w_ih'].astype(f32)            # (3H0, E+Z+Y)
    w_hh = params['w_hh'].astype(f32)            # (3H0, H0)
    b_ih = params['b_ih'].astype(f32)
    b_hh = params['b_hh'].astype(f32)
    w_in_T = w_ih[:, :E + Z].T                   # (E+Z, 3H0)  non-recurrent part
    wy_T = w_ih[:, E + Z:].T                     # (Y, 3H0)    recurrent y part
    whh_T = w_hh.T                               # (H0, 3H0)

    w_in_pad = jnp.zeros((E + Z, 3 * Hp), f32)
    for g in range(3):
        w_in_pad = w_in_pad.at[:, g * Hp:g * Hp + H0].set(
            w_in_T[:, g * H0:(g + 1) * H0])
    bias_static = jnp.zeros((1, 3 * Hp), f32)
    bias_static = bias_static.at[0, 0:H0].set(b_ih[:H0] + b_hh[:H0])
    bias_static = bias_static.at[0, Hp:Hp + H0].set(
        b_ih[H0:2 * H0] + b_hh[H0:2 * H0])
    bias_static = bias_static.at[0, 2 * Hp:2 * Hp + H0].set(b_ih[2 * H0:])

    # Fused recurrent weight: [h_prev | y_prev] @ w_rec -> [r | z | n_i | n_h]
    w_rec = jnp.zeros((Hp + Yp, 4 * Hp), f32)
    w_rec = w_rec.at[:H0, 0:H0].set(whh_T[:, :H0])                       # r (h)
    w_rec = w_rec.at[:H0, Hp:Hp + H0].set(whh_T[:, H0:2 * H0])           # z (h)
    w_rec = w_rec.at[:H0, 3 * Hp:3 * Hp + H0].set(whh_T[:, 2 * H0:])     # n_h
    w_rec = w_rec.at[Hp:Hp + Y, 0:H0].set(wy_T[:, :H0])                  # r (y)
    w_rec = w_rec.at[Hp:Hp + Y, Hp:Hp + H0].set(wy_T[:, H0:2 * H0])      # z (y)
    w_rec = w_rec.at[Hp:Hp + Y, 2 * Hp:2 * Hp + H0].set(wy_T[:, 2 * H0:])  # n_i

    bhh_n = jnp.zeros((1, Hp), f32).at[0, :H0].set(b_hh[2 * H0:])

    w1_pad = jnp.zeros((Hp, H1p), f32).at[:H0, :H1].set(params['fc1_w'].T)
    b1_pad = jnp.zeros((1, H1p), f32).at[0, :H1].set(params['fc1_b'])
    wf_pad = jnp.zeros((H1p, Yp), f32).at[:H1, :Y].set(params['fc_w'].T)
    bf_pad = jnp.zeros((1, Yp), f32).at[0, :Y].set(params['fc_b'])

    h0_pad = jnp.zeros((B_pad, Hp), f32).at[:, :H0].set(
        jnp.broadcast_to(params['h0'][0], (B_pad, H0)).astype(f32))
    yinit_pad = jnp.zeros((B_pad, Yp), f32).at[:B, :Y].set(y_init)

    # ---- batch-major inputs (no time-major transpose), padded B / L ----
    x = jnp.concatenate([embed_out, zs], axis=-1).astype(f32)   # (B, L, E+Z)
    x = jnp.pad(x, ((0, B_pad - B), (0, L_pad - L), (0, 0)))

    # Hoisted, fully parallel input projection.
    gi_flat = input_projection(x.reshape(B_pad * L_pad, E + Z),
                               w_in_pad, bias_static)            # (B_pad*L_pad, 3Hp)
    # Flatten time into lanes: per-chunk / per-step slices are 128-aligned.
    gi = gi_flat.reshape(B_pad, L_pad * 3 * Hp)

    kernel = functools.partial(decoder_rnn_kernel, hp=Hp, y_dim=Y, t_chunk=T)

    def const(*shape):
        return pl.BlockSpec(shape, lambda c, _n=len(shape): (0,) * _n)

    y_out = pl.pallas_call(
        kernel,
        out_shape=jax.ShapeDtypeStruct((B_pad, L_pad * Y), f32),
        grid_spec=pltpu.PrefetchScalarGridSpec(
            num_scalar_prefetch=0,
            grid=(n_chunks,),
            in_specs=[
                pl.BlockSpec((B_pad, T * 3 * Hp), lambda c: (0, c)),  # gi chunk
                const(B_pad, Yp),          # y_init
                const(B_pad, Hp),          # h0
                const(Hp + Yp, 4 * Hp),    # fused recurrent weight
                const(1, Hp),              # b_hh (n gate)
                const(Hp, H1p),            # fc_layers weight
                const(1, H1p),             # fc_layers bias
                const(H1p, Yp),            # fc weight
                const(1, Yp),              # fc bias
            ],
            out_specs=pl.BlockSpec((B_pad, T * Y), lambda c: (0, c)),
            scratch_shapes=[
                pltpu.VMEM((B_pad, Hp), jnp.float32),   # h carry across chunks
                pltpu.VMEM((B_pad, Yp), jnp.float32),   # y carry across chunks
            ],
        ),
        compiler_params=pltpu.CompilerParams(
            dimension_semantics=("arbitrary",)),   # serial recurrence: must stay
    )(gi, yinit_pad, h0_pad, w_rec, bhh_n, w1_pad, b1_pad, wf_pad, bf_pad)

    # Free reshape (no transpose), then drop batch / time padding.
    return y_out.reshape(B_pad, L_pad, Y)[:B, :L]


# -------------------- deterministic parameter init --------------------
def init_params(key, E, Z, Y, H0, H1, IVH):
    Din = E + Z + Y
    ks = jax.random.split(key, 12)

    def u(k, shape, fan_in):
        bound = 1.0 / float(np.sqrt(fan_in))
        return jax.random.uniform(k, shape, jnp.float32, -bound, bound)

    return {
        # GRU (num_rnn = 1)
        'w_ih': u(ks[0], (3 * H0, Din), H0),
        'w_hh': u(ks[1], (3 * H0, H0), H0),
        'b_ih': u(ks[2], (3 * H0,), H0),
        'b_hh': u(ks[3], (3 * H0,), H0),
        # fc_layers: Linear(H0, H1) + ReLU
        'fc1_w': u(ks[4], (H1, H0), H0),
        'fc1_b': u(ks[5], (H1,), H0),
        # fc: Linear(H1, Y)
        'fc_w': u(ks[6], (Y, H1), H1),
        'fc_b': u(ks[7], (Y,), H1),
        # fc_init_val: Linear(Y, IVH) -> ReLU -> Dropout(eval) -> Linear(IVH, Y)
        'init1_w': u(ks[8], (IVH, Y), Y),
        'init1_b': u(ks[9], (IVH,), Y),
        'init2_w': u(ks[10], (Y, IVH), IVH),
        'init2_b': u(ks[11], (Y,), IVH),
        # h0 parameter (initialized to zeros, like the module)
        'h0': jnp.zeros((1, 1, H0), jnp.float32),
    }


# -------------------- pure-JAX reference (mirrors PyTorch semantics) ----------
def reference_forward(y0, embed_out, zs, params):
    B, L, E = embed_out.shape
    H0 = params['w_hh'].shape[1]
    h = jnp.maximum(y0 @ params['init1_w'].T + params['init1_b'], 0.0)
    y_t = h @ params['init2_w'].T + params['init2_b']
    h_t = jnp.broadcast_to(params['h0'][0], (B, H0))
    w_ih, w_hh = params['w_ih'], params['w_hh']
    b_ih, b_hh = params['b_ih'], params['b_hh']
    ys = []
    for t in range(L):
        x = jnp.concatenate([embed_out[:, t], zs[:, t], y_t], axis=-1)
        gi = x @ w_ih.T + b_ih
        gh = h_t @ w_hh.T + b_hh
        r = jax.nn.sigmoid(gi[:, :H0] + gh[:, :H0])
        u = jax.nn.sigmoid(gi[:, H0:2 * H0] + gh[:, H0:2 * H0])
        n = jnp.tanh(gi[:, 2 * H0:] + r * gh[:, 2 * H0:])
        h_t = (1.0 - u) * n + u * h_t
        o = jnp.maximum(h_t, 0.0)
        o = jnp.maximum(o @ params['fc1_w'].T + params['fc1_b'], 0.0)
        y_t = o @ params['fc_w'].T + params['fc_b']
        ys.append(y_t)
    return jnp.stack(ys, axis=1)


if __name__ == "__main__":
    # small shapes consistent with the module's forward
    B, L = 2, 8
    E, Z, Y = 16, 8, 8            # embed_out_dim, z_dim, y_dim
    H0, H1 = 32, 32               # hidden_dims = [32, 32]
    IVH = 16                      # init_val_hidden

    key = jax.random.PRNGKey(0)
    kp, k1, k2, k3 = jax.random.split(key, 4)
    params = init_params(kp, E, Z, Y, H0, H1, IVH)

    y0 = jax.random.normal(k1, (B, Y), jnp.float32)
    embed_out = jax.random.normal(k2, (B, L, E), jnp.float32)
    zs = jax.random.normal(k3, (B, L, Z), jnp.float32)

    out = decoder_rnn_forward(y0, embed_out, zs, params)
    out = jax.block_until_ready(out)

    ref = reference_forward(y0, embed_out, zs, params)
    np.testing.assert_allclose(np.asarray(out), np.asarray(ref),
                               rtol=1e-4, atol=1e-4)
    assert out.shape == (B, L, Y)
    print("KERNEL_OK")
</pallas_src>

<mosaic_0001>
module attributes {stable_mosaic.version = 11 : i64} {
  func.func @input_proj_kernel(%arg0: i32, %arg1: memref<128x24xf32, #tpu.memory_space<vmem>>, %arg2: memref<24x384xf32, #tpu.memory_space<vmem>>, %arg3: memref<1x384xf32, #tpu.memory_space<vmem>>, %arg4: memref<128x384xf32, #tpu.memory_space<vmem>>) attributes {dimension_semantics = [#tpu.dimension_semantics<parallel>], iteration_bounds = array<i64: 1>, scalar_prefetch = 0 : i64, scratch_operands = 0 : i64, tpu.core_type = #tpu.core_type<tc>, window_params = [{transform_indices = @transform_0, window_bounds = array<i64: 128, 24>}, {pipeline_mode = #tpu.pipeline_mode<synchronous>, transform_indices = @transform_1, window_bounds = array<i64: 24, 384>}, {pipeline_mode = #tpu.pipeline_mode<synchronous>, transform_indices = @transform_2, window_bounds = array<i64: 1, 384>}, {transform_indices = @transform_3, window_bounds = array<i64: 128, 384>}]} {
    %c0 = arith.constant 0 : index
    %c0_0 = arith.constant 0 : index
    %0 = vector.load %arg1[%c0, %c0_0] : memref<128x24xf32, #tpu.memory_space<vmem>>, vector<128x24xf32>
    %c0_1 = arith.constant 0 : index
    %c0_2 = arith.constant 0 : index
    %1 = vector.load %arg2[%c0_1, %c0_2] : memref<24x384xf32, #tpu.memory_space<vmem>>, vector<24x384xf32>
    %cst = arith.constant dense<0.000000e+00> : vector<128x384xf32>
    %2 = tpu.matmul %0, %1, %cst {dimension_numbers = #tpu.dot_dimension_numbers<[1], [0], [0], [1], [0, 0, 1, 1], [], []>} : vector<128x24xf32>, vector<24x384xf32>, vector<128x384xf32> -> vector<128x384xf32>
    %c0_3 = arith.constant 0 : index
    %c0_4 = arith.constant 0 : index
    %3 = vector.load %arg3[%c0_3, %c0_4] : memref<1x384xf32, #tpu.memory_space<vmem>>, vector<1x384xf32>
    %4 = vector.broadcast %3 : vector<1x384xf32> to vector<128x384xf32>
    %5 = arith.addf %2, %4 : vector<128x384xf32>
    %c0_5 = arith.constant 0 : index
    %c0_6 = arith.constant 0 : index
    %6 = vector.load %arg4[%c0_5, %c0_6] : memref<128x384xf32, #tpu.memory_space<vmem>>, vector<128x384xf32>
    tpu.vector_store %arg4[%c0_5, %c0_6], %5 {strides = array<i32>} : memref<128x384xf32, #tpu.memory_space<vmem>>, vector<128x384xf32>,
    return
  }
  func.func @transform_0(%arg0: i32) -> (i32, i32) {
    %c0_i32 = arith.constant 0 : i32
    %c0_i32_0 = arith.constant 0 : i32
    return %arg0, %c0_i32 : i32, i32
  }
  func.func @transform_1(%arg0: i32) -> (i32, i32) {
    %c0_i32 = arith.constant 0 : i32
    %c0_i32_0 = arith.constant 0 : i32
    %c0_i32_1 = arith.constant 0 : i32
    return %c0_i32, %c0_i32_0 : i32, i32
  }
  func.func @transform_2(%arg0: i32) -> (i32, i32) {
    %c0_i32 = arith.constant 0 : i32
    %c0_i32_0 = arith.constant 0 : i32
    %c0_i32_1 = arith.constant 0 : i32
    return %c0_i32, %c0_i32_0 : i32, i32
  }
  func.func @transform_3(%arg0: i32) -> (i32, i32) {
    %c0_i32 = arith.constant 0 : i32
    %c0_i32_0 = arith.constant 0 : i32
    return %arg0, %c0_i32 : i32, i32
  }
}

</mosaic_0001>

<llo_original>
// kernel: tpu_custom_call.1
$region0: #{tpu_custom_call.1}
  #allocation0 [shape = 'u32[]', space=smem, size = 0x4, offset = 0x4, fixed_abs, tag = 'smem constant byte address 0x4 - core index']
  #allocation1 [shape = 'u32[72,128]{1,0:T(1,128)}', space=vmem, size = 0x9000, scoped, tag = 'internal scratch']
  %s0 = inlined_call_operand.vmem [shape: f32[128,24], index: 0, kind: input, shape index: {}]
  %s1 = inlined_call_operand.vmem [shape: f32[24,384], index: 1, kind: input, shape index: {}]
  %s2 = inlined_call_operand.vmem [shape: f32[1,384], index: 2, kind: input, shape index: {}]
  %s3 = inlined_call_operand.hbm [shape: f32[128,384], index: 3, kind: output, shape index: {}]
  %s4 = sld [smem:[#allocation0]]
  $region22: #{tpu_custom_call.1} parent=0
    _
  %s6 = ssub.s32 1, %s4
  %s7 = scalar_select 0, %s6, %s4
  $region1: #{tpu_custom_call.1} parent=0
    #allocation2 [shape = 'u8[196608]{0}', space=vmem, size = 0x30000, scoped, tag = 'output window, operand 0, single buffered']
    #allocation3 [shape = 's32[1]{0}', space=sflag, size = 0x4, scoped, tag = 'scoped memory for tpu_custom_call.1']
    %8 = vsyncpa [#allocation3], 0
    // Predicated region
    $region2: #{tpu_custom_call.1} parent=1 // pred_check
      _
    $region3: #{tpu_custom_call.1} parent=1 // pred_check_branch
      %10 = sbr.rel (0) target = $region5
    $region4: #{tpu_custom_call.1} parent=1 // pred_region
      _
    $region5: #{tpu_custom_call.1} parent=1 // pred_fallthru
      _
    // Predicated region
    $region6: #{tpu_custom_call.1} parent=1 // pred_check
      _
    $region7: #{tpu_custom_call.1} parent=1 // pred_check_branch
      %12 = sbr.rel (0) target = $region9
    $region8: #{tpu_custom_call.1} parent=1 // pred_region
      _
    $region9: #{tpu_custom_call.1} parent=1 // pred_fallthru
      _
    // Predicated region
    $region10: #{tpu_custom_call.1} parent=1 // pred_check
      _
    $region11: #{tpu_custom_call.1} parent=1 // pred_check_branch
      %14 = sbr.rel (0) target = $region13
    $region12: #{tpu_custom_call.1} parent=1 // pred_region
      _
    $region13: #{tpu_custom_call.1} parent=1 // pred_fallthru
      _
    %v15 = vld [vmem:[%s0] sm:$0xff]
    %v16 = vld [vmem:[%s0 + $0x8] sm:$0xff]
    %v17 = vld [vmem:[%s0 + $0x10] sm:$0xff]
    %v18 = vld [vmem:[%s0 + $0x18] sm:$0xff]
    %v19 = vld [vmem:[%s0 + $0x20] sm:$0xff]
    %v20 = vld [vmem:[%s0 + $0x28] sm:$0xff]
    %v21 = vld [vmem:[%s0 + $0x30] sm:$0xff]
    %v22 = vld [vmem:[%s0 + $0x38] sm:$0xff]
    %v23 = vld [vmem:[%s0 + $0x40] sm:$0xff]
    %v24 = vld [vmem:[%s0 + $0x48] sm:$0xff]
    %v25 = vld [vmem:[%s0 + $0x50] sm:$0xff]
    %v26 = vld [vmem:[%s0 + $0x58] sm:$0xff]
    %v27 = vld [vmem:[%s0 + $0x60] sm:$0xff]
    %v28 = vld [vmem:[%s0 + $0x68] sm:$0xff]
    %v29 = vld [vmem:[%s0 + $0x70] sm:$0xff]
    %v30 = vld [vmem:[%s0 + $0x78] sm:$0xff]
    %v31 = vld [vmem:[%s1] sm:$0xff]
    %v32 = vld [vmem:[%s1 + $0x8] sm:$0xff]
    %v33 = vld [vmem:[%s1 + $0x10] sm:$0xff]
    %v34 = vld [vmem:[%s1 + $0x18] sm:$0xff]
    %v35 = vld [vmem:[%s1 + $0x20] sm:$0xff]
    %v36 = vld [vmem:[%s1 + $0x28] sm:$0xff]
    %v37 = vld [vmem:[%s1 + $0x30] sm:$0xff]
    %v38 = vld [vmem:[%s1 + $0x38] sm:$0xff]
    %v39 = vld [vmem:[%s1 + $0x40] sm:$0xff]
    %v40 = vld [vmem:[%s2] sm:$0x7]
    %v42 = vperm.slane %v40, 0
    %v43 = vperm.slane %v40, 1
    %v44 = vperm.slane %v40, 2
    %vm48 = vcmask 195584
    %v50 = vsel %vm48, %v15, 0
    %v53 = vsel %vm48, %v16, 0
    %v56 = vsel %vm48, %v17, 0
    %v59 = vsel %vm48, %v18, 0
    %v62 = vsel %vm48, %v19, 0
    %v65 = vsel %vm48, %v20, 0
    %v68 = vsel %vm48, %v21, 0
    %v71 = vsel %vm48, %v22, 0
    %v74 = vsel %vm48, %v23, 0
    %v77 = vsel %vm48, %v24, 0
    %v80 = vsel %vm48, %v25, 0
    %v83 = vsel %vm48, %v26, 0
    %v86 = vsel %vm48, %v27, 0
    %v89 = vsel %vm48, %v28, 0
    %v92 = vsel %vm48, %v29, 0
    %v95 = vsel %vm48, %v30, 0
    %97 = vmatpush.msra.mxu0 0.0
    %98 = vmatpush.msra.mxu0 0.0
    %99 = vmatpush.msra.mxu0 0.0
    %100 = vmatpush.msra.mxu0 0.0
    %101 = vmatpush.msra.mxu0 0.0
    %102 = vmatpush.msra.mxu0 0.0
    %103 = vmatpush.msra.mxu0 0.0
    %104 = vmatpush.msra.mxu0 0.0
    %105 = vmatpush.msra.mxu0 0.0
    %106 = vmatpush.msra.mxu0 0.0
    %107 = vmatpush.msra.mxu0 0.0
    %108 = vmatpush.msra.mxu0 0.0
    %109 = vmatpush.msra.mxu0 0.0
    %110 = vmatpush.msra.mxu0 %v37
    %111 = vmatpush.msra.mxu0 %v34
    %112 = vmatpush.msra.mxu0 %v31
    %113 = vmatmul.f32.gmra.mxu0 %v50
    %v114 = vpop.f32.mrf.mxu0
    %v115 = vadd.f32 %v42, %v114
    %116 = vmatmul.f32.gmra.mxu0 %v53
    %v117 = vpop.f32.mrf.mxu0
    %v118 = vadd.f32 %v42, %v117
    %119 = vmatmul.f32.gmra.mxu0 %v56
    %v120 = vpop.f32.mrf.mxu0
    %v121 = vadd.f32 %v42, %v120
    %122 = vmatmul.f32.gmra.mxu0 %v59
    %v123 = vpop.f32.mrf.mxu0
    %v124 = vadd.f32 %v42, %v123
    %125 = vmatmul.f32.gmra.mxu0 %v62
    %v126 = vpop.f32.mrf.mxu0
    %v127 = vadd.f32 %v42, %v126
    %128 = vmatmul.f32.gmra.mxu0 %v65
    %v129 = vpop.f32.mrf.mxu0
    %v130 = vadd.f32 %v42, %v129
    %131 = vmatmul.f32.gmra.mxu0 %v68
    %v132 = vpop.f32.mrf.mxu0
    %v133 = vadd.f32 %v42, %v132
    %134 = vmatmul.f32.gmra.mxu0 %v71
    %v135 = vpop.f32.mrf.mxu0
    %v136 = vadd.f32 %v42, %v135
    %137 = vmatmul.f32.gmra.mxu0 %v74
    %v138 = vpop.f32.mrf.mxu0
    %v139 = vadd.f32 %v42, %v138
    %140 = vmatmul.f32.gmra.mxu0 %v77
    %v141 = vpop.f32.mrf.mxu0
    %v142 = vadd.f32 %v42, %v141
    %143 = vmatmul.f32.gmra.mxu0 %v80
    %v144 = vpop.f32.mrf.mxu0
    %v145 = vadd.f32 %v42, %v144
    %146 = vmatmul.f32.gmra.mxu0 %v83
    %v147 = vpop.f32.mrf.mxu0
    %v148 = vadd.f32 %v42, %v147
    %149 = vmatmul.f32.gmra.mxu0 %v86
    %v150 = vpop.f32.mrf.mxu0
    %v151 = vadd.f32 %v42, %v150
    %152 = vmatmul.f32.gmra.mxu0 %v89
    %v153 = vpop.f32.mrf.mxu0
    %v154 = vadd.f32 %v42, %v153
    %155 = vmatmul.f32.gmra.mxu0 %v92
    %v156 = vpop.f32.mrf.mxu0
    %v157 = vadd.f32 %v42, %v156
    %158 = vmatmul.f32.gmra.mxu0 %v95
    %v159 = vpop.f32.mrf.mxu0
    %v160 = vadd.f32 %v42, %v159
    %161 = vdwg.mxu0
    %162 = vmatpush.msra.mxu0 0.0
    %163 = vmatpush.msra.mxu0 0.0
    %164 = vmatpush.msra.mxu0 0.0
    %165 = vmatpush.msra.mxu0 0.0
    %166 = vmatpush.msra.mxu0 0.0
    %167 = vmatpush.msra.mxu0 0.0
    %168 = vmatpush.msra.mxu0 0.0
    %169 = vmatpush.msra.mxu0 0.0
    %170 = vmatpush.msra.mxu0 0.0
    %171 = vmatpush.msra.mxu0 0.0
    %172 = vmatpush.msra.mxu0 0.0
    %173 = vmatpush.msra.mxu0 0.0
    %174 = vmatpush.msra.mxu0 0.0
    %175 = vmatpush.msra.mxu0 %v38
    %176 = vmatpush.msra.mxu0 %v35
    %177 = vmatpush.msra.mxu0 %v32
    %178 = vmatmul.f32.gmra.mxu0 %v50
    %v179 = vpop.f32.mrf.mxu0
    %v180 = vadd.f32 %v43, %v179
    %181 = vmatmul.f32.gmra.mxu0 %v53
    %v182 = vpop.f32.mrf.mxu0
    %v183 = vadd.f32 %v43, %v182
    %184 = vmatmul.f32.gmra.mxu0 %v56
    %v185 = vpop.f32.mrf.mxu0
    %v186 = vadd.f32 %v43, %v185
    %187 = vmatmul.f32.gmra.mxu0 %v59
    %v188 = vpop.f32.mrf.mxu0
    %v189 = vadd.f32 %v43, %v188
    %190 = vmatmul.f32.gmra.mxu0 %v62
    %v191 = vpop.f32.mrf.mxu0
    %v192 = vadd.f32 %v43, %v191
    %193 = vmatmul.f32.gmra.mxu0 %v65
    %v194 = vpop.f32.mrf.mxu0
    %v195 = vadd.f32 %v43, %v194
    %196 = vmatmul.f32.gmra.mxu0 %v68
    %v197 = vpop.f32.mrf.mxu0
    %v198 = vadd.f32 %v43, %v197
    %199 = vmatmul.f32.gmra.mxu0 %v71
    %v200 = vpop.f32.mrf.mxu0
    %v201 = vadd.f32 %v43, %v200
    %202 = vmatmul.f32.gmra.mxu0 %v74
    %v203 = vpop.f32.mrf.mxu0
    %v204 = vadd.f32 %v43, %v203
    %205 = vmatmul.f32.gmra.mxu0 %v77
    %v206 = vpop.f32.mrf.mxu0
    %v207 = vadd.f32 %v43, %v206
    %208 = vmatmul.f32.gmra.mxu0 %v80
    %v209 = vpop.f32.mrf.mxu0
    %v210 = vadd.f32 %v43, %v209
    %211 = vmatmul.f32.gmra.mxu0 %v83
    %v212 = vpop.f32.mrf.mxu0
    %v213 = vadd.f32 %v43, %v212
    %214 = vmatmul.f32.gmra.mxu0 %v86
    %v215 = vpop.f32.mrf.mxu0
    %v216 = vadd.f32 %v43, %v215
    %217 = vmatmul.f32.gmra.mxu0 %v89
    %v218 = vpop.f32.mrf.mxu0
    %v219 = vadd.f32 %v43, %v218
    %220 = vmatmul.f32.gmra.mxu0 %v92
    %v221 = vpop.f32.mrf.mxu0
    %v222 = vadd.f32 %v43, %v221
    %223 = vmatmul.f32.gmra.mxu0 %v95
    %v224 = vpop.f32.mrf.mxu0
    %v225 = vadd.f32 %v43, %v224
    %226 = vdwg.mxu0
    %227 = vmatpush.msra.mxu0 0.0
    %228 = vmatpush.msra.mxu0 0.0
    %229 = vmatpush.msra.mxu0 0.0
    %230 = vmatpush.msra.mxu0 0.0
    %231 = vmatpush.msra.mxu0 0.0
    %232 = vmatpush.msra.mxu0 0.0
    %233 = vmatpush.msra.mxu0 0.0
    %234 = vmatpush.msra.mxu0 0.0
    %235 = vmatpush.msra.mxu0 0.0
    %236 = vmatpush.msra.mxu0 0.0
    %237 = vmatpush.msra.mxu0 0.0
    %238 = vmatpush.msra.mxu0 0.0
    %239 = vmatpush.msra.mxu0 0.0
    %240 = vmatpush.msra.mxu0 %v39
    %241 = vmatpush.msra.mxu0 %v36
    %242 = vmatpush.msra.mxu0 %v33
    %243 = vmatmul.f32.gmra.mxu0 %v50
    %v244 = vpop.f32.mrf.mxu0
    %v245 = vadd.f32 %v44, %v244
    %246 = vmatmul.f32.gmra.mxu0 %v53
    %v247 = vpop.f32.mrf.mxu0
    %v248 = vadd.f32 %v44, %v247
    %249 = vmatmul.f32.gmra.mxu0 %v56
    %v250 = vpop.f32.mrf.mxu0
    %v251 = vadd.f32 %v44, %v250
    %252 = vmatmul.f32.gmra.mxu0 %v59
    %v253 = vpop.f32.mrf.mxu0
    %v254 = vadd.f32 %v44, %v253
    %255 = vmatmul.f32.gmra.mxu0 %v62
    %v256 = vpop.f32.mrf.mxu0
    %v257 = vadd.f32 %v44, %v256
    %258 = vmatmul.f32.gmra.mxu0 %v65
    %v259 = vpop.f32.mrf.mxu0
    %v260 = vadd.f32 %v44, %v259
    %261 = vmatmul.f32.gmra.mxu0 %v68
    %v262 = vpop.f32.mrf.mxu0
    %v263 = vadd.f32 %v44, %v262
    %264 = vmatmul.f32.gmra.mxu0 %v71
    %v265 = vpop.f32.mrf.mxu0
    %v266 = vadd.f32 %v44, %v265
    %267 = vmatmul.f32.gmra.mxu0 %v74
    %v268 = vpop.f32.mrf.mxu0
    %v269 = vadd.f32 %v44, %v268
    %270 = vmatmul.f32.gmra.mxu0 %v77
    %v271 = vpop.f32.mrf.mxu0
    %v272 = vadd.f32 %v44, %v271
    %273 = vmatmul.f32.gmra.mxu0 %v80
    %v274 = vpop.f32.mrf.mxu0
    %v275 = vadd.f32 %v44, %v274
    %276 = vmatmul.f32.gmra.mxu0 %v83
    %v277 = vpop.f32.mrf.mxu0
    %v278 = vadd.f32 %v44, %v277
    %279 = vmatmul.f32.gmra.mxu0 %v86
    %v280 = vpop.f32.mrf.mxu0
    %v281 = vadd.f32 %v44, %v280
    %282 = vmatmul.f32.gmra.mxu0 %v89
    %v283 = vpop.f32.mrf.mxu0
    %v284 = vadd.f32 %v44, %v283
    %285 = vmatmul.f32.gmra.mxu0 %v92
    %v286 = vpop.f32.mrf.mxu0
    %v287 = vadd.f32 %v44, %v286
    %288 = vmatmul.f32.gmra.mxu0 %v95
    %v289 = vpop.f32.mrf.mxu0
    %v290 = vadd.f32 %v44, %v289
    %291 = vdwg.mxu0
    %292 = vst [vmem:[#allocation2] sm:$0xff] %v115
    %293 = vst [vmem:[#allocation2 + $0x8] sm:$0xff] %v180
    %294 = vst [vmem:[#allocation2 + $0x10] sm:$0xff] %v245
    %295 = vst [vmem:[#allocation2 + $0x18] sm:$0xff] %v118
    %296 = vst [vmem:[#allocation2 + $0x20] sm:$0xff] %v183
    %297 = vst [vmem:[#allocation2 + $0x28] sm:$0xff] %v248
    %298 = vst [vmem:[#allocation2 + $0x30] sm:$0xff] %v121
    %299 = vst [vmem:[#allocation2 + $0x38] sm:$0xff] %v186
    %300 = vst [vmem:[#allocation2 + $0x40] sm:$0xff] %v251
    %301 = vst [vmem:[#allocation2 + $0x48] sm:$0xff] %v124
    %302 = vst [vmem:[#allocation2 + $0x50] sm:$0xff] %v189
    %303 = vst [vmem:[#allocation2 + $0x58] sm:$0xff] %v254
    %304 = vst [vmem:[#allocation2 + $0x60] sm:$0xff] %v127
    %305 = vst [vmem:[#allocation2 + $0x68] sm:$0xff] %v192
    %306 = vst [vmem:[#allocation2 + $0x70] sm:$0xff] %v257
    %307 = vst [vmem:[#allocation2 + $0x78] sm:$0xff] %v130
    %308 = vst [vmem:[#allocation2 + $0x80] sm:$0xff] %v195
    %309 = vst [vmem:[#allocation2 + $0x88] sm:$0xff] %v260
    %310 = vst [vmem:[#allocation2 + $0x90] sm:$0xff] %v133
    %311 = vst [vmem:[#allocation2 + $0x98] sm:$0xff] %v198
    %312 = vst [vmem:[#allocation2 + $0xa0] sm:$0xff] %v263
    %313 = vst [vmem:[#allocation2 + $0xa8] sm:$0xff] %v136
    %314 = vst [vmem:[#allocation2 + $0xb0] sm:$0xff] %v201
    %315 = vst [vmem:[#allocation2 + $0xb8] sm:$0xff] %v266
    %316 = vst [vmem:[#allocation2 + $0xc0] sm:$0xff] %v139
    %317 = vst [vmem:[#allocation2 + $0xc8] sm:$0xff] %v204
    %318 = vst [vmem:[#allocation2 + $0xd0] sm:$0xff] %v269
    %319 = vst [vmem:[#allocation2 + $0xd8] sm:$0xff] %v142
    %320 = vst [vmem:[#allocation2 + $0xe0] sm:$0xff] %v207
    %321 = vst [vmem:[#allocation2 + $0xe8] sm:$0xff] %v272
    %322 = vst [vmem:[#allocation2 + $0xf0] sm:$0xff] %v145
    %323 = vst [vmem:[#allocation2 + $0xf8] sm:$0xff] %v210
    %324 = vst [vmem:[#allocation2 + $0x100] sm:$0xff] %v275
    %325 = vst [vmem:[#allocation2 + $0x108] sm:$0xff] %v148
    %326 = vst [vmem:[#allocation2 + $0x110] sm:$0xff] %v213
    %327 = vst [vmem:[#allocation2 + $0x118] sm:$0xff] %v278
    %328 = vst [vmem:[#allocation2 + $0x120] sm:$0xff] %v151
    %329 = vst [vmem:[#allocation2 + $0x128] sm:$0xff] %v216
    %330 = vst [vmem:[#allocation2 + $0x130] sm:$0xff] %v281
    %331 = vst [vmem:[#allocation2 + $0x138] sm:$0xff] %v154
    %332 = vst [vmem:[#allocation2 + $0x140] sm:$0xff] %v219
    %333 = vst [vmem:[#allocation2 + $0x148] sm:$0xff] %v284
    %334 = vst [vmem:[#allocation2 + $0x150] sm:$0xff] %v157
    %335 = vst [vmem:[#allocation2 + $0x158] sm:$0xff] %v222
    %336 = vst [vmem:[#allocation2 + $0x160] sm:$0xff] %v287
    %337 = vst [vmem:[#allocation2 + $0x168] sm:$0xff] %v160
    %338 = vst [vmem:[#allocation2 + $0x170] sm:$0xff] %v225
    %339 = vst [vmem:[#allocation2 + $0x178] sm:$0xff] %v290
    // Predicated region
    $region14: #{tpu_custom_call.1} parent=1 // pred_check
      _
    $region15: #{tpu_custom_call.1} parent=1 // pred_check_branch
      %341 = sbr.rel (0) target = $region17
    $region16: #{tpu_custom_call.1} parent=1 // pred_region
      %343 = vsyncadd [#allocation3], 0
      %s344 = sshll.u32 [#allocation2], 4
      %s345 = int_to_ptr.vmem [resolvable:$true] %s344
      %s346 = sshll.u32 %s3, 4
      %s347 = int_to_ptr.hbm [resolvable:$true] %s346
      %352 = dma.vmem_to_hbm [thread:$0]  %s345, 6144, %s347, [#allocation3], 384, 384, 24
    $region17: #{tpu_custom_call.1} parent=1 // pred_fallthru
      _
    // Predicated region
    $region18: #{tpu_custom_call.1} parent=1 // pred_check
      _
    $region19: #{tpu_custom_call.1} parent=1 // pred_check_branch
      %354 = sbr.rel (0) target = $region21
    $region20: #{tpu_custom_call.1} parent=1 // pred_region
      %356 = dma.done [#allocation3], 6144
    $region21: #{tpu_custom_call.1} parent=1 // pred_fallthru
      _
    %357 = vsyncpa [#allocation3], 1

</llo_original>
